<compile_context>
chip_gen: v6e
topology: v6e:2x2x1
jax: 0.10.0
libtpu: 0.0.40
codegen_flags: <defaults>
</compile_context>

<pallas_src>
import math
import numpy as np
import jax
import jax.numpy as jnp
from jax import lax
from jax.experimental import pallas as pl
from jax.experimental.pallas import tpu as pltpu


def _round_up(x, m):
    return ((x + m - 1) // m) * m


def _spfc_kernel(off_ref, cnt_ref, rows_ref, cols_ref, vals_ref, w_ref, b_ref,
                 out_ref, acc_ref, row_iota_ref, col_iota_ref):
    # off_ref/cnt_ref : SMEM int32 [n_node_tiles]  (scalar-prefetched chunk table)
    # rows_ref  : VMEM int32 [1, tile_nnz]
    # cols_ref  : VMEM int32 [1, tile_nnz]   (lane-major; no padded (nnz,1) block)
    # vals_ref  : VMEM f32   [1, tile_nnz]
    # w_ref     : VMEM f32   [in_ch_pad, out_ch_pad]   (resident weight)
    # b_ref     : VMEM f32   [1, out_ch_pad]
    # out_ref   : VMEM f32   [tile_nodes, out_ch_pad]
    # acc_ref   : VMEM f32   [tile_nodes, in_ch_pad]   densified A tile
    # row_iota_ref : VMEM int32 [tile_nodes, tile_nnz] cached sublane iota
    # col_iota_ref : VMEM int32 [in_ch_pad, tile_nnz]  cached sublane iota
    i = pl.program_id(0)          # node tile (parallel)
    k = pl.program_id(1)          # nnz chunk within this node tile (arbitrary)
    tile_nodes = acc_ref.shape[0]

    @pl.when(k == 0)
    def _():
        acc_ref[...] = jnp.zeros_like(acc_ref)
        # Built once per node tile (not per chunk).  Initialising under k == 0
        # keeps every TensorCore's private scratch valid if the parallel node
        # axis is split across cores (v7x megacore).
        row_iota_ref[...] = lax.broadcasted_iota(jnp.int32, row_iota_ref.shape, 0)
        col_iota_ref[...] = lax.broadcasted_iota(jnp.int32, col_iota_ref.shape, 0)

    # Only this node tile's own chunks carry data; skip padded grid steps.
    @pl.when(k < cnt_ref[i])
    def _():
        node_base = i * tile_nodes
        rows_local = rows_ref[...] - node_base                 # [1, tile_nnz]
        # scaled_rows_t[m, e] = v_e if row_e == node_base + m else 0  (fused where)
        scaled_rows_t = jnp.where(row_iota_ref[...] == rows_local,
                                  vals_ref[...], 0.0)          # [tile_nodes, tile_nnz]
        # onehot_cols_t[f, e] = 1 if col_e == f else 0
        onehot_cols_t = jnp.where(col_iota_ref[...] == cols_ref[...],
                                  1.0, 0.0)                    # [in_ch_pad, tile_nnz]
        # Densify on the MXU (duplicate (row, col) entries accumulate, matching
        # torch_sparse.spmm).  NT contraction: rhs transpose goes to the XLU.
        acc_ref[...] += lax.dot_general(
            scaled_rows_t, onehot_cols_t,
            dimension_numbers=(((1,), (1,)), ((), ())),
            preferred_element_type=jnp.float32)

    # Epilogue: single MXU matmul with the resident weight + bias fold-in.
    @pl.when(k == pl.num_programs(1) - 1)
    def _():
        out_ref[...] = (
            jnp.dot(acc_ref[...], w_ref[...], preferred_element_type=jnp.float32)
            + b_ref[...]
        ).astype(out_ref.dtype)


def _partition_coo_by_node_tile(rows, cols, vals, tile_nodes, n_node_tiles,
                                tile_nnz):
    """Sort COO entries by node tile and lay each tile's entries out in whole
    tile_nnz chunks (padding with zero-valued entries).  Returns the padded
    arrays plus per-tile chunk offsets / counts (for SMEM scalar prefetch)."""
    nnz = int(rows.shape[0])
    tile_of = rows // tile_nodes
    order = np.argsort(tile_of, kind="stable")
    rows_s, cols_s, vals_s = rows[order], cols[order], vals[order]
    tile_s = tile_of[order]

    counts = np.bincount(tile_of, minlength=n_node_tiles)[:n_node_tiles]
    counts = counts.astype(np.int64)
    chunks = (counts + tile_nnz - 1) // tile_nnz            # chunks per tile (may be 0)
    chunk_off = np.concatenate([[0], np.cumsum(chunks)[:-1]]).astype(np.int64)
    total_chunks = int(chunks.sum())
    max_chunks = max(1, int(chunks.max()) if chunks.size else 1)
    # Extra zero chunks so off[i] + k stays in bounds for every k < max_chunks.
    n_chunks_alloc = total_chunks + max_chunks
    nnz_alloc = n_chunks_alloc * tile_nnz

    group_start = np.concatenate([[0], np.cumsum(counts)[:-1]]).astype(np.int64)
    dest = chunk_off[tile_s] * tile_nnz + (np.arange(nnz) - group_start[tile_s])

    rows_p = np.zeros(nnz_alloc, np.int32)
    cols_p = np.zeros(nnz_alloc, np.int32)
    vals_p = np.zeros(nnz_alloc, np.float32)
    rows_p[dest] = rows_s
    cols_p[dest] = cols_s
    vals_p[dest] = vals_s
    return (rows_p, cols_p, vals_p,
            chunk_off.astype(np.int32), chunks.astype(np.int32), max_chunks)


def sparse_fully_connected(feature_indices, feature_values, weight_matrix,
                           bias, num_nodes):
    """num_nodes must be a static Python int (PyTorch derives it via .item()).
    The per-tile COO chunk layout is computed host-side, so this wrapper is
    called eagerly (not under jit), mirroring the .item() host sync in torch."""
    in_channels, out_channels = map(int, weight_matrix.shape)
    nnz = int(feature_values.shape[0])

    # Padded / tiled sizes: lane-dense channels, MXU-friendly contraction dims.
    out_ch_pad = _round_up(out_channels, 128)
    in_ch_pad = _round_up(in_channels, 128)
    if num_nodes > 256:
        tile_nodes = 256
    else:
        tile_nodes = _round_up(num_nodes, 8)
        # v7x has 2 TensorCores: prefer >= 2 node tiles on the parallel axis.
        if tile_nodes >= 16:
            tile_nodes = _round_up(tile_nodes // 2, 8)
    num_nodes_pad = _round_up(num_nodes, tile_nodes)
    n_node_tiles = num_nodes_pad // tile_nodes
    tile_nnz = 512 if nnz > 512 else max(128, _round_up(max(nnz, 1), 128))

    # Host-side per-node-tile partitioning of the COO stream (numpy).
    rows_np = np.asarray(feature_indices[0]).astype(np.int64)
    cols_np = np.asarray(feature_indices[1]).astype(np.int64)
    vals_np = np.asarray(feature_values).astype(np.float32)
    (rows_p, cols_p, vals_p,
     chunk_off, chunk_cnt, max_chunks) = _partition_coo_by_node_tile(
        rows_np, cols_np, vals_np, tile_nodes, n_node_tiles, tile_nnz)
    nnz_alloc = rows_p.shape[0]

    rows2d = jnp.asarray(rows_p).reshape(1, nnz_alloc)      # lane-major
    cols2d = jnp.asarray(cols_p).reshape(1, nnz_alloc)      # lane-major (no (nnz,1) block)
    vals2d = jnp.asarray(vals_p).reshape(1, nnz_alloc)
    chunk_off_arr = jnp.asarray(chunk_off)                   # int32 [n_node_tiles]
    chunk_cnt_arr = jnp.asarray(chunk_cnt)                   # int32 [n_node_tiles]

    # Zero-padded weight / bias (padded rows/cols contribute exact zeros).
    w_pad = jnp.zeros((in_ch_pad, out_ch_pad), jnp.float32)
    w_pad = w_pad.at[:in_channels, :out_channels].set(
        weight_matrix.astype(jnp.float32))
    b_pad = jnp.zeros((1, out_ch_pad), jnp.float32)
    b_pad = b_pad.at[0, :out_channels].set(bias.astype(jnp.float32))

    grid = (n_node_tiles, max_chunks)

    # Explicit VMEM budget: resident W + bias, double-buffered COO chunks and
    # output tile, acc + cached iotas, plus one-hot temporaries and headroom.
    vmem_need = 4 * (
        in_ch_pad * out_ch_pad                       # W (single-buffered)
        + 8 * out_ch_pad                             # bias tile (sublane padded)
        + 2 * 3 * 8 * tile_nnz                       # rows/cols/vals chunks, 2 bufs
        + 2 * tile_nodes * out_ch_pad                # output tile, 2 bufs
        + tile_nodes * in_ch_pad                     # acc scratch
        + (tile_nodes + in_ch_pad) * tile_nnz        # cached iotas
        + 2 * (tile_nodes + in_ch_pad) * tile_nnz    # where / one-hot temporaries
    )
    vmem_limit = int(min(64 << 20, max(32 << 20, vmem_need + (4 << 20))))

    def _call(single_buffer_weights):
        resident = ({"pipeline_mode": pl.Buffered(1)}
                    if single_buffer_weights else {})
        coo_map = lambda i, k, off, cnt: (0, off[i] + k)     # data-dependent chunk
        const_map = lambda i, k, off, cnt: (0, 0)
        grid_spec = pltpu.PrefetchScalarGridSpec(
            num_scalar_prefetch=2,
            grid=grid,
            in_specs=[
                pl.BlockSpec((1, tile_nnz), coo_map),                      # rows
                pl.BlockSpec((1, tile_nnz), coo_map),                      # cols
                pl.BlockSpec((1, tile_nnz), coo_map),                      # values
                pl.BlockSpec((in_ch_pad, out_ch_pad), const_map,
                             **resident),                                  # weight
                pl.BlockSpec((1, out_ch_pad), const_map, **resident),      # bias
            ],
            out_specs=pl.BlockSpec((tile_nodes, out_ch_pad),
                                   lambda i, k, off, cnt: (i, 0)),
            scratch_shapes=[
                pltpu.VMEM((tile_nodes, in_ch_pad), jnp.float32),   # acc
                pltpu.VMEM((tile_nodes, tile_nnz), jnp.int32),      # row iota cache
                pltpu.VMEM((in_ch_pad, tile_nnz), jnp.int32),       # col iota cache
            ],
        )
        out = pl.pallas_call(
            _spfc_kernel,
            out_shape=jax.ShapeDtypeStruct((num_nodes_pad, out_ch_pad),
                                           jnp.float32),
            grid_spec=grid_spec,
            compiler_params=pltpu.CompilerParams(
                dimension_semantics=("parallel", "arbitrary"),
                vmem_limit_bytes=vmem_limit),
        )(chunk_off_arr, chunk_cnt_arr, rows2d, cols2d, vals2d, w_pad, b_pad)
        return jax.block_until_ready(out)

    try:
        out_padded = _call(True)
    except Exception:
        # Fallback for environments without BlockSpec pipeline_mode support.
        out_padded = _call(False)

    # Strip padding.
    return out_padded[:num_nodes, :out_channels]


if __name__ == "__main__":
    key = jax.random.PRNGKey(0)
    k_w, k_b, k_rows, k_cols, k_vals = jax.random.split(key, 5)

    # Small, forward-implied shapes.
    num_nodes = 8          # graph nodes
    in_channels = 16       # sparse feature dimension
    out_channels = 32      # hidden size
    nnz = 48               # number of nonzero feature entries

    # Deterministic parameter init (matches nn.init.xavier_uniform_ / uniform()).
    xavier_bound = math.sqrt(6.0 / (in_channels + out_channels))
    weight_matrix = jax.random.uniform(
        k_w, (in_channels, out_channels), jnp.float32,
        minval=-xavier_bound, maxval=xavier_bound)
    stdv = 1.0 / math.sqrt(out_channels)
    bias = jax.random.uniform(
        k_b, (out_channels,), jnp.float32, minval=-stdv, maxval=stdv)

    # Deterministic sparse feature matrix in COO form.
    rows = jax.random.randint(k_rows, (nnz,), 0, num_nodes, dtype=jnp.int32)
    cols = jax.random.randint(k_cols, (nnz,), 0, in_channels, dtype=jnp.int32)
    # Make sure max row / max col hit the full extents (mirrors torch .max()+1).
    rows = rows.at[0].set(num_nodes - 1)
    cols = cols.at[0].set(in_channels - 1)
    feature_indices = jnp.stack([rows, cols], axis=0)            # [2, nnz]
    feature_values = jax.random.uniform(
        k_vals, (nnz,), jnp.float32, minval=0.1, maxval=1.0)     # [nnz]

    # PyTorch computes number_of_nodes from the indices via .item(); do the same
    # here as a static host-side value.
    n_nodes_static = int(feature_indices[0].max()) + 1

    out = sparse_fully_connected(feature_indices, feature_values,
                                 weight_matrix, bias, n_nodes_static)
    out = jax.block_until_ready(out)

    # Pure-JAX reference: densify + matmul + bias.
    dense = jnp.zeros((n_nodes_static, in_channels), jnp.float32)
    dense = dense.at[feature_indices[0], feature_indices[1]].add(feature_values)
    ref = dense @ weight_matrix + bias

    np.testing.assert_allclose(np.asarray(out), np.asarray(ref),
                               rtol=1e-5, atol=1e-5)
    print("KERNEL_OK")
</pallas_src>

<mosaic_0001>
module attributes {stable_mosaic.version = 11 : i64} {
  func.func @_spfc_kernel(%arg0: i32, %arg1: i32, %arg2: memref<1xi32, #tpu.memory_space<smem>>, %arg3: memref<1xi32, #tpu.memory_space<smem>>, %arg4: memref<1x128xi32, #tpu.memory_space<vmem>>, %arg5: memref<1x128xi32, #tpu.memory_space<vmem>>, %arg6: memref<1x128xf32, #tpu.memory_space<vmem>>, %arg7: memref<128x128xf32, #tpu.memory_space<vmem>>, %arg8: memref<1x128xf32, #tpu.memory_space<vmem>>, %arg9: memref<8x128xf32, #tpu.memory_space<vmem>>, %arg10: memref<8x128xf32, #tpu.memory_space<vmem>>, %arg11: memref<8x128xi32, #tpu.memory_space<vmem>>, %arg12: memref<128x128xi32, #tpu.memory_space<vmem>>) attributes {dimension_semantics = [#tpu.dimension_semantics<parallel>, #tpu.dimension_semantics<arbitrary>], iteration_bounds = array<i64: 1, 1>, scalar_prefetch = 2 : i64, scratch_operands = 3 : i64, tpu.core_type = #tpu.core_type<tc>, window_params = [{transform_indices = @transform_0, window_bounds = array<i64: 1, 128>}, {transform_indices = @transform_1, window_bounds = array<i64: 1, 128>}, {transform_indices = @transform_2, window_bounds = array<i64: 1, 128>}, {pipeline_mode = #tpu.pipeline_mode<synchronous>, transform_indices = @transform_3, window_bounds = array<i64: 128, 128>}, {pipeline_mode = #tpu.pipeline_mode<synchronous>, transform_indices = @transform_4, window_bounds = array<i64: 1, 128>}, {transform_indices = @transform_5, window_bounds = array<i64: 8, 128>}]} {
    %c0_i32 = arith.constant 0 : i32
    %0 = arith.cmpi eq, %arg1, %c0_i32 : i32
    %1 = arith.extui %0 : i1 to i32
    %c0_i32_0 = arith.constant 0 : i32
    %2 = arith.cmpi ne, %1, %c0_i32_0 : i32
    scf.if %2 {
      %cst = arith.constant 0.000000e+00 : f32
      %11 = vector.broadcast %cst : f32 to vector<8x128xf32>
      %c0 = arith.constant 0 : index
      %c0_4 = arith.constant 0 : index
      %12 = vector.load %arg10[%c0, %c0_4] : memref<8x128xf32, #tpu.memory_space<vmem>>, vector<8x128xf32>
      tpu.vector_store %arg10[%c0, %c0_4], %11 {strides = array<i32>} : memref<8x128xf32, #tpu.memory_space<vmem>>, vector<8x128xf32>,
      %13 = tpu.iota {dimensions = array<i32: 0>} : vector<8x128xi32>
      %c0_5 = arith.constant 0 : index
      %c0_6 = arith.constant 0 : index
      %14 = vector.load %arg11[%c0_5, %c0_6] : memref<8x128xi32, #tpu.memory_space<vmem>>, vector<8x128xi32>
      tpu.vector_store %arg11[%c0_5, %c0_6], %13 {strides = array<i32>} : memref<8x128xi32, #tpu.memory_space<vmem>>, vector<8x128xi32>,
      %15 = tpu.iota {dimensions = array<i32: 0>} : vector<128x128xi32>
      %c0_7 = arith.constant 0 : index
      %c0_8 = arith.constant 0 : index
      %16 = vector.load %arg12[%c0_7, %c0_8] : memref<128x128xi32, #tpu.memory_space<vmem>>, vector<128x128xi32>
      tpu.vector_store %arg12[%c0_7, %c0_8], %15 {strides = array<i32>} : memref<128x128xi32, #tpu.memory_space<vmem>>, vector<128x128xi32>,
    } else {
    }
    %3 = arith.index_cast %arg0 : i32 to index
    %4 = memref.load %arg3[%3] : memref<1xi32, #tpu.memory_space<smem>>
    %5 = arith.cmpi slt, %arg1, %4 : i32
    %6 = arith.extui %5 : i1 to i32
    %c0_i32_1 = arith.constant 0 : i32
    %7 = arith.cmpi ne, %6, %c0_i32_1 : i32
    scf.if %7 {
      %c8_i32 = arith.constant 8 : i32
      %11 = arith.muli %arg0, %c8_i32 : i32
      %c0 = arith.constant 0 : index
      %c0_4 = arith.constant 0 : index
      %12 = vector.load %arg4[%c0, %c0_4] : memref<1x128xi32, #tpu.memory_space<vmem>>, vector<1x128xi32>
      %13 = vector.broadcast %11 : i32 to vector<1x128xi32>
      %14 = arith.subi %12, %13 : vector<1x128xi32>
      %c0_5 = arith.constant 0 : index
      %c0_6 = arith.constant 0 : index
      %15 = vector.load %arg11[%c0_5, %c0_6] : memref<8x128xi32, #tpu.memory_space<vmem>>, vector<8x128xi32>
      %16 = vector.broadcast %14 : vector<1x128xi32> to vector<8x128xi32>
      %17 = arith.cmpi eq, %15, %16 : vector<8x128xi32>
      %c0_7 = arith.constant 0 : index
      %c0_8 = arith.constant 0 : index
      %18 = vector.load %arg6[%c0_7, %c0_8] : memref<1x128xf32, #tpu.memory_space<vmem>>, vector<1x128xf32>
      %cst = arith.constant 0.000000e+00 : f32
      %19 = vector.shape_cast %18 : vector<1x128xf32> to vector<1x128xf32>
      %20 = vector.broadcast %19 : vector<1x128xf32> to vector<8x128xf32>
      %21 = vector.broadcast %cst : f32 to vector<8x128xf32>
      %22 = arith.select %17, %20, %21 : vector<8x128xi1>, vector<8x128xf32>
      %c0_9 = arith.constant 0 : index
      %c0_10 = arith.constant 0 : index
      %23 = vector.load %arg12[%c0_9, %c0_10] : memref<128x128xi32, #tpu.memory_space<vmem>>, vector<128x128xi32>
      %c0_11 = arith.constant 0 : index
      %c0_12 = arith.constant 0 : index
      %24 = vector.load %arg5[%c0_11, %c0_12] : memref<1x128xi32, #tpu.memory_space<vmem>>, vector<1x128xi32>
      %25 = vector.broadcast %24 : vector<1x128xi32> to vector<128x128xi32>
      %26 = arith.cmpi eq, %23, %25 : vector<128x128xi32>
      %cst_13 = arith.constant 1.000000e+00 : f32
      %cst_14 = arith.constant 0.000000e+00 : f32
      %27 = vector.broadcast %cst_13 : f32 to vector<128x128xf32>
      %28 = vector.broadcast %cst_14 : f32 to vector<128x128xf32>
      %29 = arith.select %26, %27, %28 : vector<128x128xi1>, vector<128x128xf32>
      %c0_15 = arith.constant 0 : index
      %c0_16 = arith.constant 0 : index
      %30 = vector.load %arg10[%c0_15, %c0_16] : memref<8x128xf32, #tpu.memory_space<vmem>>, vector<8x128xf32>
      %cst_17 = arith.constant dense<0.000000e+00> : vector<8x128xf32>
      %31 = tpu.matmul %22, %29, %cst_17 {dimension_numbers = #tpu.dot_dimension_numbers<[1], [1], [0], [0], [0, 0, 1, 0], [], []>} : vector<8x128xf32>, vector<128x128xf32>, vector<8x128xf32> -> vector<8x128xf32>
      %32 = arith.addf %30, %31 : vector<8x128xf32>
      %c0_18 = arith.constant 0 : index
      %c0_19 = arith.constant 0 : index
      %33 = vector.load %arg10[%c0_18, %c0_19] : memref<8x128xf32, #tpu.memory_space<vmem>>, vector<8x128xf32>
      tpu.vector_store %arg10[%c0_18, %c0_19], %32 {strides = array<i32>} : memref<8x128xf32, #tpu.memory_space<vmem>>, vector<8x128xf32>,
    } else {
    }
    %c0_i32_2 = arith.constant 0 : i32
    %8 = arith.cmpi eq, %arg1, %c0_i32_2 : i32
    %9 = arith.extui %8 : i1 to i32
    %c0_i32_3 = arith.constant 0 : i32
    %10 = arith.cmpi ne, %9, %c0_i32_3 : i32
    scf.if %10 {
      %c0 = arith.constant 0 : index
      %c0_4 = arith.constant 0 : index
      %11 = vector.load %arg10[%c0, %c0_4] : memref<8x128xf32, #tpu.memory_space<vmem>>, vector<8x128xf32>
      %c0_5 = arith.constant 0 : index
      %c0_6 = arith.constant 0 : index
      %12 = vector.load %arg7[%c0_5, %c0_6] : memref<128x128xf32, #tpu.memory_space<vmem>>, vector<128x128xf32>
      %cst = arith.constant dense<0.000000e+00> : vector<8x128xf32>
      %13 = tpu.matmul %11, %12, %cst {dimension_numbers = #tpu.dot_dimension_numbers<[1], [0], [0], [1], [0, 0, 1, 1], [], []>} : vector<8x128xf32>, vector<128x128xf32>, vector<8x128xf32> -> vector<8x128xf32>
      %c0_7 = arith.constant 0 : index
      %c0_8 = arith.constant 0 : index
      %14 = vector.load %arg8[%c0_7, %c0_8] : memref<1x128xf32, #tpu.memory_space<vmem>>, vector<1x128xf32>
      %15 = vector.broadcast %14 : vector<1x128xf32> to vector<8x128xf32>
      %16 = arith.addf %13, %15 : vector<8x128xf32>
      %c0_9 = arith.constant 0 : index
      %c0_10 = arith.constant 0 : index
      %17 = vector.load %arg9[%c0_9, %c0_10] : memref<8x128xf32, #tpu.memory_space<vmem>>, vector<8x128xf32>
      tpu.vector_store %arg9[%c0_9, %c0_10], %16 {strides = array<i32>} : memref<8x128xf32, #tpu.memory_space<vmem>>, vector<8x128xf32>,
    } else {
    }
    return
  }
  func.func @transform_0(%arg0: i32, %arg1: i32, %arg2: memref<1xi32, #tpu.memory_space<smem>>, %arg3: memref<1xi32, #tpu.memory_space<smem>>) -> (i32, i32) {
    %0 = arith.index_cast %arg0 : i32 to index
    %1 = memref.load %arg2[%0] : memref<1xi32, #tpu.memory_space<smem>>
    %2 = arith.addi %1, %arg1 : i32
    %c0_i32 = arith.constant 0 : i32
    %c0_i32_0 = arith.constant 0 : i32
    return %c0_i32, %2 : i32, i32
  }
  func.func @transform_1(%arg0: i32, %arg1: i32, %arg2: memref<1xi32, #tpu.memory_space<smem>>, %arg3: memref<1xi32, #tpu.memory_space<smem>>) -> (i32, i32) {
    %0 = arith.index_cast %arg0 : i32 to index
    %1 = memref.load %arg2[%0] : memref<1xi32, #tpu.memory_space<smem>>
    %2 = arith.addi %1, %arg1 : i32
    %c0_i32 = arith.constant 0 : i32
    %c0_i32_0 = arith.constant 0 : i32
    return %c0_i32, %2 : i32, i32
  }
  func.func @transform_2(%arg0: i32, %arg1: i32, %arg2: memref<1xi32, #tpu.memory_space<smem>>, %arg3: memref<1xi32, #tpu.memory_space<smem>>) -> (i32, i32) {
    %0 = arith.index_cast %arg0 : i32 to index
    %1 = memref.load %arg2[%0] : memref<1xi32, #tpu.memory_space<smem>>
    %2 = arith.addi %1, %arg1 : i32
    %c0_i32 = arith.constant 0 : i32
    %c0_i32_0 = arith.constant 0 : i32
    return %c0_i32, %2 : i32, i32
  }
  func.func @transform_3(%arg0: i32, %arg1: i32, %arg2: memref<1xi32, #tpu.memory_space<smem>>, %arg3: memref<1xi32, #tpu.memory_space<smem>>) -> (i32, i32) {
    %c0_i32 = arith.constant 0 : i32
    %c0_i32_0 = arith.constant 0 : i32
    %c0_i32_1 = arith.constant 0 : i32
    return %c0_i32, %c0_i32_0 : i32, i32
  }
  func.func @transform_4(%arg0: i32, %arg1: i32, %arg2: memref<1xi32, #tpu.memory_space<smem>>, %arg3: memref<1xi32, #tpu.memory_space<smem>>) -> (i32, i32) {
    %c0_i32 = arith.constant 0 : i32
    %c0_i32_0 = arith.constant 0 : i32
    %c0_i32_1 = arith.constant 0 : i32
    return %c0_i32, %c0_i32_0 : i32, i32
  }
  func.func @transform_5(%arg0: i32, %arg1: i32, %arg2: memref<1xi32, #tpu.memory_space<smem>>, %arg3: memref<1xi32, #tpu.memory_space<smem>>) -> (i32, i32) {
    %c0_i32 = arith.constant 0 : i32
    %c0_i32_0 = arith.constant 0 : i32
    return %arg0, %c0_i32 : i32, i32
  }
}

module attributes {stable_mosaic.version = 11 : i64} {
  func.func @_spfc_kernel(%arg0: i32, %arg1: i32, %arg2: memref<1xi32, #tpu.memory_space<smem>>, %arg3: memref<1xi32, #tpu.memory_space<smem>>, %arg4: memref<1x128xi32, #tpu.memory_space<vmem>>, %arg5: memref<1x128xi32, #tpu.memory_space<vmem>>, %arg6: memref<1x128xf32, #tpu.memory_space<vmem>>, %arg7: memref<128x128xf32, #tpu.memory_space<vmem>>, %arg8: memref<1x128xf32, #tpu.memory_space<vmem>>, %arg9: memref<8x128xf32, #tpu.memory_space<vmem>>, %arg10: memref<8x128xf32, #tpu.memory_space<vmem>>, %arg11: memref<8x128xi32, #tpu.memory_space<vmem>>, %arg12: memref<128x128xi32, #tpu.memory_space<vmem>>) attributes {dimension_semantics = [#tpu.dimension_semantics<parallel>, #tpu.dimension_semantics<arbitrary>], iteration_bounds = array<i64: 1, 1>, scalar_prefetch = 2 : i64, scratch_operands = 3 : i64, tpu.core_type = #tpu.core_type<tc>, window_params = [{transform_indices = @transform_0, window_bounds = array<i64: 1, 128>}, {transform_indices = @transform_1, window_bounds = array<i64: 1, 128>}, {transform_indices = @transform_2, window_bounds = array<i64: 1, 128>}, {pipeline_mode = #tpu.pipeline_mode<synchronous>, transform_indices = @transform_3, window_bounds = array<i64: 128, 128>}, {pipeline_mode = #tpu.pipeline_mode<synchronous>, transform_indices = @transform_4, window_bounds = array<i64: 1, 128>}, {transform_indices = @transform_5, window_bounds = array<i64: 8, 128>}]} {
    %c0_i32 = arith.constant 0 : i32
    %0 = arith.cmpi eq, %arg1, %c0_i32 : i32
    %1 = arith.extui %0 : i1 to i32
    %c0_i32_0 = arith.constant 0 : i32
    %2 = arith.cmpi ne, %1, %c0_i32_0 : i32
    scf.if %2 {
      %cst = arith.constant 0.000000e+00 : f32
      %11 = vector.broadcast %cst : f32 to vector<8x128xf32>
      %c0 = arith.constant 0 : index
      %c0_4 = arith.constant 0 : index
      %12 = vector.load %arg10[%c0, %c0_4] : memref<8x128xf32, #tpu.memory_space<vmem>>, vector<8x128xf32>
      tpu.vector_store %arg10[%c0, %c0_4], %11 {strides = array<i32>} : memref<8x128xf32, #tpu.memory_space<vmem>>, vector<8x128xf32>,
      %13 = tpu.iota {dimensions = array<i32: 0>} : vector<8x128xi32>
      %c0_5 = arith.constant 0 : index
      %c0_6 = arith.constant 0 : index
      %14 = vector.load %arg11[%c0_5, %c0_6] : memref<8x128xi32, #tpu.memory_space<vmem>>, vector<8x128xi32>
      tpu.vector_store %arg11[%c0_5, %c0_6], %13 {strides = array<i32>} : memref<8x128xi32, #tpu.memory_space<vmem>>, vector<8x128xi32>,
      %15 = tpu.iota {dimensions = array<i32: 0>} : vector<128x128xi32>
      %c0_7 = arith.constant 0 : index
      %c0_8 = arith.constant 0 : index
      %16 = vector.load %arg12[%c0_7, %c0_8] : memref<128x128xi32, #tpu.memory_space<vmem>>, vector<128x128xi32>
      tpu.vector_store %arg12[%c0_7, %c0_8], %15 {strides = array<i32>} : memref<128x128xi32, #tpu.memory_space<vmem>>, vector<128x128xi32>,
    } else {
    }
    %3 = arith.index_cast %arg0 : i32 to index
    %4 = memref.load %arg3[%3] : memref<1xi32, #tpu.memory_space<smem>>
    %5 = arith.cmpi slt, %arg1, %4 : i32
    %6 = arith.extui %5 : i1 to i32
    %c0_i32_1 = arith.constant 0 : i32
    %7 = arith.cmpi ne, %6, %c0_i32_1 : i32
    scf.if %7 {
      %c8_i32 = arith.constant 8 : i32
      %11 = arith.muli %arg0, %c8_i32 : i32
      %c0 = arith.constant 0 : index
      %c0_4 = arith.constant 0 : index
      %12 = vector.load %arg4[%c0, %c0_4] : memref<1x128xi32, #tpu.memory_space<vmem>>, vector<1x128xi32>
      %13 = vector.broadcast %11 : i32 to vector<1x128xi32>
      %14 = arith.subi %12, %13 : vector<1x128xi32>
      %c0_5 = arith.constant 0 : index
      %c0_6 = arith.constant 0 : index
      %15 = vector.load %arg11[%c0_5, %c0_6] : memref<8x128xi32, #tpu.memory_space<vmem>>, vector<8x128xi32>
      %16 = vector.broadcast %14 : vector<1x128xi32> to vector<8x128xi32>
      %17 = arith.cmpi eq, %15, %16 : vector<8x128xi32>
      %c0_7 = arith.constant 0 : index
      %c0_8 = arith.constant 0 : index
      %18 = vector.load %arg6[%c0_7, %c0_8] : memref<1x128xf32, #tpu.memory_space<vmem>>, vector<1x128xf32>
      %cst = arith.constant 0.000000e+00 : f32
      %19 = vector.shape_cast %18 : vector<1x128xf32> to vector<1x128xf32>
      %20 = vector.broadcast %19 : vector<1x128xf32> to vector<8x128xf32>
      %21 = vector.broadcast %cst : f32 to vector<8x128xf32>
      %22 = arith.select %17, %20, %21 : vector<8x128xi1>, vector<8x128xf32>
      %c0_9 = arith.constant 0 : index
      %c0_10 = arith.constant 0 : index
      %23 = vector.load %arg12[%c0_9, %c0_10] : memref<128x128xi32, #tpu.memory_space<vmem>>, vector<128x128xi32>
      %c0_11 = arith.constant 0 : index
      %c0_12 = arith.constant 0 : index
      %24 = vector.load %arg5[%c0_11, %c0_12] : memref<1x128xi32, #tpu.memory_space<vmem>>, vector<1x128xi32>
      %25 = vector.broadcast %24 : vector<1x128xi32> to vector<128x128xi32>
      %26 = arith.cmpi eq, %23, %25 : vector<128x128xi32>
      %cst_13 = arith.constant 1.000000e+00 : f32
      %cst_14 = arith.constant 0.000000e+00 : f32
      %27 = vector.broadcast %cst_13 : f32 to vector<128x128xf32>
      %28 = vector.broadcast %cst_14 : f32 to vector<128x128xf32>
      %29 = arith.select %26, %27, %28 : vector<128x128xi1>, vector<128x128xf32>
      %c0_15 = arith.constant 0 : index
      %c0_16 = arith.constant 0 : index
      %30 = vector.load %arg10[%c0_15, %c0_16] : memref<8x128xf32, #tpu.memory_space<vmem>>, vector<8x128xf32>
      %cst_17 = arith.constant dense<0.000000e+00> : vector<8x128xf32>
      %31 = tpu.matmul %22, %29, %cst_17 {dimension_numbers = #tpu.dot_dimension_numbers<[1], [1], [0], [0], [0, 0, 1, 0], [], []>} : vector<8x128xf32>, vector<128x128xf32>, vector<8x128xf32> -> vector<8x128xf32>
      %32 = arith.addf %30, %31 : vector<8x128xf32>
      %c0_18 = arith.constant 0 : index
      %c0_19 = arith.constant 0 : index
      %33 = vector.load %arg10[%c0_18, %c0_19] : memref<8x128xf32, #tpu.memory_space<vmem>>, vector<8x128xf32>
      tpu.vector_store %arg10[%c0_18, %c0_19], %32 {strides = array<i32>} : memref<8x128xf32, #tpu.memory_space<vmem>>, vector<8x128xf32>,
    } else {
    }
    %c0_i32_2 = arith.constant 0 : i32
    %8 = arith.cmpi eq, %arg1, %c0_i32_2 : i32
    %9 = arith.extui %8 : i1 to i32
    %c0_i32_3 = arith.constant 0 : i32
    %10 = arith.cmpi ne, %9, %c0_i32_3 : i32
    scf.if %10 {
      %c0 = arith.constant 0 : index
      %c0_4 = arith.constant 0 : index
      %11 = vector.load %arg10[%c0, %c0_4] : memref<8x128xf32, #tpu.memory_space<vmem>>, vector<8x128xf32>
      %c0_5 = arith.constant 0 : index
      %c0_6 = arith.constant 0 : index
      %12 = vector.load %arg7[%c0_5, %c0_6] : memref<128x128xf32, #tpu.memory_space<vmem>>, vector<128x128xf32>
      %cst = arith.constant dense<0.000000e+00> : vector<8x128xf32>
      %13 = tpu.matmul %11, %12, %cst {dimension_numbers = #tpu.dot_dimension_numbers<[1], [0], [0], [1], [0, 0, 1, 1], [], []>} : vector<8x128xf32>, vector<128x128xf32>, vector<8x128xf32> -> vector<8x128xf32>
      %c0_7 = arith.constant 0 : index
      %c0_8 = arith.constant 0 : index
      %14 = vector.load %arg8[%c0_7, %c0_8] : memref<1x128xf32, #tpu.memory_space<vmem>>, vector<1x128xf32>
      %15 = vector.broadcast %14 : vector<1x128xf32> to vector<8x128xf32>
      %16 = arith.addf %13, %15 : vector<8x128xf32>
      %c0_9 = arith.constant 0 : index
      %c0_10 = arith.constant 0 : index
      %17 = vector.load %arg9[%c0_9, %c0_10] : memref<8x128xf32, #tpu.memory_space<vmem>>, vector<8x128xf32>
      tpu.vector_store %arg9[%c0_9, %c0_10], %16 {strides = array<i32>} : memref<8x128xf32, #tpu.memory_space<vmem>>, vector<8x128xf32>,
    } else {
    }
    return
  }
  func.func @transform_0(%arg0: i32, %arg1: i32, %arg2: memref<1xi32, #tpu.memory_space<smem>>, %arg3: memref<1xi32, #tpu.memory_space<smem>>) -> (i32, i32) {
    %0 = arith.index_cast %arg0 : i32 to index
    %1 = memref.load %arg2[%0] : memref<1xi32, #tpu.memory_space<smem>>
    %2 = arith.addi %1, %arg1 : i32
    %c0_i32 = arith.constant 0 : i32
    %c0_i32_0 = arith.constant 0 : i32
    return %c0_i32, %2 : i32, i32
  }
  func.func @transform_1(%arg0: i32, %arg1: i32, %arg2: memref<1xi32, #tpu.memory_space<smem>>, %arg3: memref<1xi32, #tpu.memory_space<smem>>) -> (i32, i32) {
    %0 = arith.index_cast %arg0 : i32 to index
    %1 = memref.load %arg2[%0] : memref<1xi32, #tpu.memory_space<smem>>
    %2 = arith.addi %1, %arg1 : i32
    %c0_i32 = arith.constant 0 : i32
    %c0_i32_0 = arith.constant 0 : i32
    return %c0_i32, %2 : i32, i32
  }
  func.func @transform_2(%arg0: i32, %arg1: i32, %arg2: memref<1xi32, #tpu.memory_space<smem>>, %arg3: memref<1xi32, #tpu.memory_space<smem>>) -> (i32, i32) {
    %0 = arith.index_cast %arg0 : i32 to index
    %1 = memref.load %arg2[%0] : memref<1xi32, #tpu.memory_space<smem>>
    %2 = arith.addi %1, %arg1 : i32
    %c0_i32 = arith.constant 0 : i32
    %c0_i32_0 = arith.constant 0 : i32
    return %c0_i32, %2 : i32, i32
  }
  func.func @transform_3(%arg0: i32, %arg1: i32, %arg2: memref<1xi32, #tpu.memory_space<smem>>, %arg3: memref<1xi32, #tpu.memory_space<smem>>) -> (i32, i32) {
    %c0_i32 = arith.constant 0 : i32
    %c0_i32_0 = arith.constant 0 : i32
    %c0_i32_1 = arith.constant 0 : i32
    return %c0_i32, %c0_i32_0 : i32, i32
  }
  func.func @transform_4(%arg0: i32, %arg1: i32, %arg2: memref<1xi32, #tpu.memory_space<smem>>, %arg3: memref<1xi32, #tpu.memory_space<smem>>) -> (i32, i32) {
    %c0_i32 = arith.constant 0 : i32
    %c0_i32_0 = arith.constant 0 : i32
    %c0_i32_1 = arith.constant 0 : i32
    return %c0_i32, %c0_i32_0 : i32, i32
  }
  func.func @transform_5(%arg0: i32, %arg1: i32, %arg2: memref<1xi32, #tpu.memory_space<smem>>, %arg3: memref<1xi32, #tpu.memory_space<smem>>) -> (i32, i32) {
    %c0_i32 = arith.constant 0 : i32
    %c0_i32_0 = arith.constant 0 : i32
    return %arg0, %c0_i32 : i32, i32
  }
}

</mosaic_0001>

<llo_original>
// kernel: tpu_custom_call.1
$region0: #{tpu_custom_call.1}
  #allocation0 [shape = 'u32[]', space=smem, size = 0x4, offset = 0x4, fixed_abs, tag = 'smem constant byte address 0x4 - core index']
  #allocation1 [shape = 'u32[144,128]{1,0:T(1,128)}', space=vmem, size = 0x12000, scoped, tag = 'internal scratch']
  #allocation2 [shape = 'f32[8,128]{1,0:T(8,128)}', space=vmem, size = 0x1000, scoped, tag = 'scratch operand']
  #allocation3 [shape = 's32[8,128]{1,0:T(8,128)}', space=vmem, size = 0x1000, scoped, tag = 'scratch operand']
  #allocation4 [shape = 's32[128,128]{1,0:T(8,128)}', space=vmem, size = 0x10000, scoped, tag = 'scratch operand']
  #allocation5 [shape = 's32[1]{0}', space=sflag, size = 0x4, scoped, tag = 'scoped memory for tpu_custom_call.1']
  #allocation6 [shape = 's32[1]{0:T(128)S(6)}', space=smem, size = 0x200, scoped, tag = 'prefetched SMEM operand 0']
  #allocation7 [shape = 's32[1]{0:T(128)S(6)}', space=smem, size = 0x200, scoped, tag = 'prefetched SMEM operand 1']
  %s0 = inlined_call_operand.<no memory space> [shape: s32[1], index: 0, kind: input, shape index: {}]
  %s1 = inlined_call_operand.<no memory space> [shape: s32[1], index: 1, kind: input, shape index: {}]
  %s2 = inlined_call_operand.vmem [shape: s32[1,256], index: 2, kind: input, shape index: {}]
  %s3 = inlined_call_operand.vmem [shape: s32[1,256], index: 3, kind: input, shape index: {}]
  %s4 = inlined_call_operand.vmem [shape: f32[1,256], index: 4, kind: input, shape index: {}]
  %s5 = inlined_call_operand.hbm [shape: f32[128,128], index: 5, kind: input, shape index: {}]
  %s6 = inlined_call_operand.vmem [shape: f32[1,128], index: 6, kind: input, shape index: {}]
  %s7 = inlined_call_operand.hbm [shape: f32[8,128], index: 7, kind: output, shape index: {}]
  %s8 = sld [smem:[#allocation0]]
  $region46: #{tpu_custom_call.1} parent=0
    _
  %s10 = ssub.s32 1, %s8
  %s11 = scalar_select 0, %s10, %s8
  %12 = sst [smem:[#allocation6]] %s0
  %13 = sst [smem:[#allocation7]] %s1
  $region1: #{tpu_custom_call.1} parent=0
    #allocation8 [shape = 'u8[65536]{0}', space=vmem, size = 0x10000, scoped, tag = 'input window, operand 5, single buffered']
    #allocation9 [shape = 's32[1]{0}', space=sflag, size = 0x4, scoped, tag = 'scoped memory for tpu_custom_call.1']
    #allocation10 [shape = 's32[1]{0}', space=sflag, size = 0x4, scoped, tag = 'scoped memory for tpu_custom_call.1']
    #allocation11 [shape = 'u8[4096]{0}', space=vmem, size = 0x1000, scoped, tag = 'output window, operand 0, single buffered']
    %14 = vsyncpa [#allocation9], 0
    %15 = vsyncpa [#allocation10], 0
    // Predicated region
    $region2: #{tpu_custom_call.1} parent=1 // pred_check
      _
    $region3: #{tpu_custom_call.1} parent=1 // pred_check_branch
      %17 = sbr.rel (0) target = $region5
    $region4: #{tpu_custom_call.1} parent=1 // pred_region
      %s18 = sld [smem:[#allocation6]]
      %s19 = sadd.s32 %s18, 0
      %p20 = scmp.lt.s32.totalorder %s19, 1
      %s21 = scalar_select %p20, %s19, 1
      %s22 = scalar_lea.vmem %s2, %s21
      %s23 = sld [smem:[#allocation6]]
      %s24 = sadd.s32 %s23, 0
    $region5: #{tpu_custom_call.1} parent=1 // pred_fallthru
      _
    // Predicated region
    $region6: #{tpu_custom_call.1} parent=1 // pred_check
      _
    $region7: #{tpu_custom_call.1} parent=1 // pred_check_branch
      %26 = sbr.rel (0) target = $region9
    $region8: #{tpu_custom_call.1} parent=1 // pred_region
      %s27 = sld [smem:[#allocation6]]
      %s28 = sadd.s32 %s27, 0
      %p29 = scmp.lt.s32.totalorder %s28, 1
      %s30 = scalar_select %p29, %s28, 1
      %s31 = scalar_lea.vmem %s3, %s30
      %s32 = sld [smem:[#allocation6]]
      %s33 = sadd.s32 %s32, 0
    $region9: #{tpu_custom_call.1} parent=1 // pred_fallthru
      _
    // Predicated region
    $region10: #{tpu_custom_call.1} parent=1 // pred_check
      _
    $region11: #{tpu_custom_call.1} parent=1 // pred_check_branch
      %35 = sbr.rel (0) target = $region13
    $region12: #{tpu_custom_call.1} parent=1 // pred_region
      %s36 = sld [smem:[#allocation6]]
      %s37 = sadd.s32 %s36, 0
      %p38 = scmp.lt.s32.totalorder %s37, 1
      %s39 = scalar_select %p38, %s37, 1
      %s40 = scalar_lea.vmem %s4, %s39
      %s41 = sld [smem:[#allocation6]]
      %s42 = sadd.s32 %s41, 0
    $region13: #{tpu_custom_call.1} parent=1 // pred_fallthru
      _
    // Predicated region
    $region14: #{tpu_custom_call.1} parent=1 // pred_check
      _
    $region15: #{tpu_custom_call.1} parent=1 // pred_check_branch
      %44 = sbr.rel (0) target = $region17
    $region16: #{tpu_custom_call.1} parent=1 // pred_region
      %s46 = ssub.s32 2048, 2048
      %47 = vsyncadd [#allocation9], %s46
      %s48 = sshll.u32 [#allocation8], 4
      %s49 = int_to_ptr.vmem [resolvable:$true] %s48
      %54 = dma.hbm_to_vmem [thread:$0]  %s5, 2048, %s49, [#allocation9], 128, 128, 8
    $region17: #{tpu_custom_call.1} parent=1 // pred_fallthru
      _
    // Predicated region
    $region18: #{tpu_custom_call.1} parent=1 // pred_check
      _
    $region19: #{tpu_custom_call.1} parent=1 // pred_check_branch
      %56 = sbr.rel (0) target = $region21
    $region20: #{tpu_custom_call.1} parent=1 // pred_region
      _
    $region21: #{tpu_custom_call.1} parent=1 // pred_fallthru
      _
    // Predicated region
    $region22: #{tpu_custom_call.1} parent=1 // pred_check
      _
    $region23: #{tpu_custom_call.1} parent=1 // pred_check_branch
      %58 = sbr.rel (0) target = $region25
    $region24: #{tpu_custom_call.1} parent=1 // pred_region
      %59 = dma.done [#allocation9], 2048
    $region25: #{tpu_custom_call.1} parent=1 // pred_fallthru
      _
    %s60 = sld [smem:[#allocation6]]
    %s61 = sadd.s32 %s60, 0
    %p62 = scmp.lt.s32.totalorder %s61, 1
    %s63 = scalar_select %p62, %s61, 1
    %s64 = scalar_lea.vmem %s2, %s63
    %s65 = sld [smem:[#allocation6]]
    %s66 = sadd.s32 %s65, 0
    %p67 = scmp.lt.s32.totalorder %s66, 1
    %s68 = scalar_select %p67, %s66, 1
    %s69 = scalar_lea.vmem %s3, %s68
    %s70 = sld [smem:[#allocation6]]
    %s71 = sadd.s32 %s70, 0
    %p72 = scmp.lt.s32.totalorder %s71, 1
    %s73 = scalar_select %p72, %s71, 1
    %s74 = scalar_lea.vmem %s4, %s73
    %s75 = sld [smem:[#allocation6]]
    %s76 = sadd.s32 %s75, 0
    %p77 = scmp.lt.s32.totalorder %s76, 1
    %s78 = scalar_select %p77, %s76, 1
    %s79 = scalar_lea.vmem %s2, %s78
    %s80 = sld [smem:[#allocation6]]
    %s81 = sadd.s32 %s80, 0
    %s82 = sld [smem:[#allocation6]]
    %s83 = sadd.s32 %s82, 0
    %p84 = scmp.lt.s32.totalorder %s83, 1
    %s85 = scalar_select %p84, %s83, 1
    %s86 = scalar_lea.vmem %s3, %s85
    %s87 = sld [smem:[#allocation6]]
    %s88 = sadd.s32 %s87, 0
    %s89 = sld [smem:[#allocation6]]
    %s90 = sadd.s32 %s89, 0
    %p91 = scmp.lt.s32.totalorder %s90, 1
    %s92 = scalar_select %p91, %s90, 1
    %s93 = scalar_lea.vmem %s4, %s92
    %s94 = sld [smem:[#allocation6]]
    %s95 = sadd.s32 %s94, 0
    %p96 = scmp.eq.s32.totalorder 0, 0
    // Predicated region
    $region26: #{tpu_custom_call.1} parent=1 // pred_check
      %p97 = pneg %p96
    $region27: #{tpu_custom_call.1} parent=1 // pred_check_branch
      %99 = sbr.rel (%p97) target = $region29
    $region28: #{tpu_custom_call.1} parent=1 // pred_region
      %100 = vst [vmem:[#allocation2] sm:$0xff] 0.0
      %v101 = vlaneseq
      %v102 = vshrl.u32 %v101, 7
      %103 = vst [vmem:[#allocation3] sm:$0xff] %v102
      %v104 = vadd.s32 %v102, 8
      %v105 = vadd.s32 %v102, 16
      %v106 = vadd.s32 %v102, 24
      %v107 = vadd.s32 %v102, 32
      %v108 = vadd.s32 %v102, 40
      %v109 = vadd.s32 %v102, 48
      %v110 = vadd.s32 %v102, 56
      %v111 = vadd.s32 %v102, 64
      %v112 = vadd.s32 %v102, 72
      %v113 = vadd.s32 %v102, 80
      %v114 = vadd.s32 %v102, 88
      %v115 = vadd.s32 %v102, 96
      %v116 = vadd.s32 %v102, 104
      %v117 = vadd.s32 %v102, 112
      %v118 = vadd.s32 %v102, 120
      %119 = vst [vmem:[#allocation4] sm:$0xff] %v102
      %120 = vst [vmem:[#allocation4 + $0x8] sm:$0xff] %v104
      %121 = vst [vmem:[#allocation4 + $0x10] sm:$0xff] %v105
      %122 = vst [vmem:[#allocation4 + $0x18] sm:$0xff] %v106
      %123 = vst [vmem:[#allocation4 + $0x20] sm:$0xff] %v107
      %124 = vst [vmem:[#allocation4 + $0x28] sm:$0xff] %v108
      %125 = vst [vmem:[#allocation4 + $0x30] sm:$0xff] %v109
      %126 = vst [vmem:[#allocation4 + $0x38] sm:$0xff] %v110
      %127 = vst [vmem:[#allocation4 + $0x40] sm:$0xff] %v111
      %128 = vst [vmem:[#allocation4 + $0x48] sm:$0xff] %v112
      %129 = vst [vmem:[#allocation4 + $0x50] sm:$0xff] %v113
      %130 = vst [vmem:[#allocation4 + $0x58] sm:$0xff] %v114
      %131 = vst [vmem:[#allocation4 + $0x60] sm:$0xff] %v115
      %132 = vst [vmem:[#allocation4 + $0x68] sm:$0xff] %v116
      %133 = vst [vmem:[#allocation4 + $0x70] sm:$0xff] %v117
      %134 = vst [vmem:[#allocation4 + $0x78] sm:$0xff] %v118
    $region29: #{tpu_custom_call.1} parent=1 // pred_fallthru
      _
    %s135 = sld [smem:[#allocation7]]
    %p136 = scmp.lt.s32.totalorder 0, %s135
    // Predicated region
    $region30: #{tpu_custom_call.1} parent=1 // pred_check
      %p137 = pneg %p136
    $region31: #{tpu_custom_call.1} parent=1 // pred_check_branch
      %139 = sbr.rel (%p137) target = $region33
    $region32: #{tpu_custom_call.1} parent=1 // pred_region
      %s140 = smul.u32 0, 8
      %v141 = vld [vmem:[%s79] sm:$0x1]
      %v142 = vstv %s140
      %v143 = vsub.s32 %v141, %v142
      %v144 = vld [vmem:[#allocation3] sm:$0xff]
      %v145 = vlaneseq
      %v146 = vshrl.u32 %v145, 7
      %v147 = vsub.s32 0, %v146
      %v148 = vrot.slane %v143, %v147
      %vm149 = vcmp.eq.s32.totalorder %v144, %v148
      %v150 = vld [vmem:[%s93] sm:$0x1]
      %v152 = vlaneseq
      %v153 = vshrl.u32 %v152, 7
      %v154 = vsub.s32 0, %v153
      %v155 = vrot.slane %v150, %v154
      %v157 = vsel %vm149, %v155, 0.0
      %v158 = vld [vmem:[#allocation4] sm:$0xff]
      %v159 = vld [vmem:[#allocation4 + $0x8] sm:$0xff]
      %v160 = vld [vmem:[#allocation4 + $0x10] sm:$0xff]
      %v161 = vld [vmem:[#allocation4 + $0x18] sm:$0xff]
      %v162 = vld [vmem:[#allocation4 + $0x20] sm:$0xff]
      %v163 = vld [vmem:[#allocation4 + $0x28] sm:$0xff]
      %v164 = vld [vmem:[#allocation4 + $0x30] sm:$0xff]
      %v165 = vld [vmem:[#allocation4 + $0x38] sm:$0xff]
      %v166 = vld [vmem:[#allocation4 + $0x40] sm:$0xff]
      %v167 = vld [vmem:[#allocation4 + $0x48] sm:$0xff]
      %v168 = vld [vmem:[#allocation4 + $0x50] sm:$0xff]
      %v169 = vld [vmem:[#allocation4 + $0x58] sm:$0xff]
      %v170 = vld [vmem:[#allocation4 + $0x60] sm:$0xff]
      %v171 = vld [vmem:[#allocation4 + $0x68] sm:$0xff]
      %v172 = vld [vmem:[#allocation4 + $0x70] sm:$0xff]
      %v173 = vld [vmem:[#allocation4 + $0x78] sm:$0xff]
      %v174 = vld [vmem:[%s86] sm:$0x1]
      %v175 = vlaneseq
      %v176 = vshrl.u32 %v175, 7
      %v177 = vsub.s32 0, %v176
      %v178 = vrot.slane %v174, %v177
      %vm179 = vcmp.eq.s32.totalorder %v158, %v178
      %vm180 = vcmp.eq.s32.totalorder %v159, %v178
      %vm181 = vcmp.eq.s32.totalorder %v160, %v178
      %vm182 = vcmp.eq.s32.totalorder %v161, %v178
      %vm183 = vcmp.eq.s32.totalorder %v162, %v178
      %vm184 = vcmp.eq.s32.totalorder %v163, %v178
      %vm185 = vcmp.eq.s32.totalorder %v164, %v178
      %vm186 = vcmp.eq.s32.totalorder %v165, %v178
      %vm187 = vcmp.eq.s32.totalorder %v166, %v178
      %vm188 = vcmp.eq.s32.totalorder %v167, %v178
      %vm189 = vcmp.eq.s32.totalorder %v168, %v178
      %vm190 = vcmp.eq.s32.totalorder %v169, %v178
      %vm191 = vcmp.eq.s32.totalorder %v170, %v178
      %vm192 = vcmp.eq.s32.totalorder %v171, %v178
      %vm193 = vcmp.eq.s32.totalorder %v172, %v178
      %vm194 = vcmp.eq.s32.totalorder %v173, %v178
      %v195 = vsel %vm179, 1.0, 0.0
      %v196 = vsel %vm180, 1.0, 0.0
      %v197 = vsel %vm181, 1.0, 0.0
      %v198 = vsel %vm182, 1.0, 0.0
      %v199 = vsel %vm183, 1.0, 0.0
      %v200 = vsel %vm184, 1.0, 0.0
      %v201 = vsel %vm185, 1.0, 0.0
      %v202 = vsel %vm186, 1.0, 0.0
      %v203 = vsel %vm187, 1.0, 0.0
      %v204 = vsel %vm188, 1.0, 0.0
      %v205 = vsel %vm189, 1.0, 0.0
      %v206 = vsel %vm190, 1.0, 0.0
      %v207 = vsel %vm191, 1.0, 0.0
      %v208 = vsel %vm192, 1.0, 0.0
      %v209 = vsel %vm193, 1.0, 0.0
      %v210 = vsel %vm194, 1.0, 0.0
      %v211 = vld [vmem:[#allocation2] sm:$0xff]
      %212 = vmatprep.subr.mxu0 0.0
      %213 = vmatpush1.xpose.msra.mxu0 %v210
      %214 = vmatprep.subr.mxu0 0.0
      %215 = vmatpush1.xpose.msra.mxu0 %v209
      %216 = vmatprep.subr.mxu0 0.0
      %217 = vmatpush1.xpose.msra.mxu0 %v208
      %218 = vmatprep.subr.mxu0 0.0
      %219 = vmatpush1.xpose.msra.mxu0 %v207
      %220 = vmatprep.subr.mxu0 0.0
      %221 = vmatpush1.xpose.msra.mxu0 %v206
      %222 = vmatprep.subr.mxu0 0.0
      %223 = vmatpush1.xpose.msra.mxu0 %v205
      %224 = vmatprep.subr.mxu0 0.0
      %225 = vmatpush1.xpose.msra.mxu0 %v204
      %226 = vmatprep.subr.mxu0 0.0
      %227 = vmatpush1.xpose.msra.mxu0 %v203
      %228 = vmatprep.subr.mxu0 0.0
      %229 = vmatpush1.xpose.msra.mxu0 %v202
      %230 = vmatprep.subr.mxu0 0.0
      %231 = vmatpush1.xpose.msra.mxu0 %v201
      %232 = vmatprep.subr.mxu0 0.0
      %233 = vmatpush1.xpose.msra.mxu0 %v200
      %234 = vmatprep.subr.mxu0 0.0
      %235 = vmatpush1.xpose.msra.mxu0 %v199
      %236 = vmatprep.subr.mxu0 0.0
      %237 = vmatpush1.xpose.msra.mxu0 %v198
      %238 = vmatprep.subr.mxu0 0.0
      %239 = vmatpush1.xpose.msra.mxu0 %v197
      %240 = vmatprep.subr.mxu0 0.0
      %241 = vmatpush1.xpose.msra.mxu0 %v196
      %242 = vmatprep.subr.mxu0 0.0
      %243 = vmatpush1.xpose.msra.mxu0 %v195
      %244 = vmatprep.subr.mxu0 0.0
      %245 = vmatpush2.xpose.msra.mxu0 0.0
      %246 = vmatprep.subr.mxu0 0.0
      %247 = vmatpush2.xpose.msra.mxu0 0.0
      %248 = vmatprep.subr.mxu0 0.0
      %249 = vmatpush2.xpose.msra.mxu0 0.0
      %250 = vmatprep.subr.mxu0 0.0
      %251 = vmatpush2.xpose.msra.mxu0 0.0
      %252 = vmatprep.subr.mxu0 0.0
      %253 = vmatpush2.xpose.msra.mxu0 0.0
      %254 = vmatprep.subr.mxu0 0.0
      %255 = vmatpush2.xpose.msra.mxu0 0.0
      %256 = vmatprep.subr.mxu0 0.0
      %257 = vmatpush2.xpose.msra.mxu0 0.0
      %258 = vmatprep.subr.mxu0 0.0
      %259 = vmatpush2.xpose.msra.mxu0 0.0
      %260 = vmatprep.subr.mxu0 0.0
      %261 = vmatpush2.xpose.msra.mxu0 0.0
      %262 = vmatprep.subr.mxu0 0.0
      %263 = vmatpush2.xpose.msra.mxu0 0.0
      %264 = vmatprep.subr.mxu0 0.0
      %265 = vmatpush2.xpose.msra.mxu0 0.0
      %266 = vmatprep.subr.mxu0 0.0
      %267 = vmatpush2.xpose.msra.mxu0 0.0
      %268 = vmatprep.subr.mxu0 0.0
      %269 = vmatpush2.xpose.msra.mxu0 0.0
      %270 = vmatprep.subr.mxu0 0.0
      %271 = vmatpush2.xpose.msra.mxu0 0.0
      %272 = vmatprep.subr.mxu0 0.0
      %273 = vmatpush2.xpose.msra.mxu0 0.0
      %274 = vmatprep.subr.mxu0 0.0
      %275 = vmatpush2.xpose.msra.mxu0 0.0
      %276 = vmatprep.mubr.f32.mxu0 0.0
      %277 = vmatmul.mubr.f32.gmra.mxu0 %v157
      %v278 = vpop.f32.mrf.mxu0
      %v279 = vadd.f32 0.0, %v278
      %v280 = vpop.f32.mrf.mxu0
      %281 = vdwg.mxu0
      %v282 = vadd.f32 %v211, %v279
      %283 = vst [vmem:[#allocation2] sm:$0xff] %v282
    $region33: #{tpu_custom_call.1} parent=1 // pred_fallthru
      _
    // Predicated region
    $region34: #{tpu_custom_call.1} parent=1 // pred_check
      %p284 = pneg %p96
    $region35: #{tpu_custom_call.1} parent=1 // pred_check_branch
      %286 = sbr.rel (%p284) target = $region37
    $region36: #{tpu_custom_call.1} parent=1 // pred_region
      %v287 = vld [vmem:[#allocation2] sm:$0xff]
      %v288 = vld [vmem:[#allocation8] sm:$0xff]
      %v289 = vld [vmem:[#allocation8 + $0x8] sm:$0xff]
      %v290 = vld [vmem:[#allocation8 + $0x10] sm:$0xff]
      %v291 = vld [vmem:[#allocation8 + $0x18] sm:$0xff]
      %v292 = vld [vmem:[#allocation8 + $0x20] sm:$0xff]
      %v293 = vld [vmem:[#allocation8 + $0x28] sm:$0xff]
      %v294 = vld [vmem:[#allocation8 + $0x30] sm:$0xff]
      %v295 = vld [vmem:[#allocation8 + $0x38] sm:$0xff]
      %v296 = vld [vmem:[#allocation8 + $0x40] sm:$0xff]
      %v297 = vld [vmem:[#allocation8 + $0x48] sm:$0xff]
      %v298 = vld [vmem:[#allocation8 + $0x50] sm:$0xff]
      %v299 = vld [vmem:[#allocation8 + $0x58] sm:$0xff]
      %v300 = vld [vmem:[#allocation8 + $0x60] sm:$0xff]
      %v301 = vld [vmem:[#allocation8 + $0x68] sm:$0xff]
      %v302 = vld [vmem:[#allocation8 + $0x70] sm:$0xff]
      %v303 = vld [vmem:[#allocation8 + $0x78] sm:$0xff]
      %v304 = vld [vmem:[%s6] sm:$0x1]
      %v306 = vlaneseq
      %v307 = vshrl.u32 %v306, 7
      %v308 = vsub.s32 0, %v307
      %v309 = vrot.slane %v304, %v308
      %311 = vmatprep.subr.mxu0 0.0
      %312 = vmatpush1.msra.mxu0 %v303
      %313 = vmatprep.subr.mxu0 0.0
      %314 = vmatpush1.msra.mxu0 %v302
      %315 = vmatprep.subr.mxu0 0.0
      %316 = vmatpush1.msra.mxu0 %v301
      %317 = vmatprep.subr.mxu0 0.0
      %318 = vmatpush1.msra.mxu0 %v300
      %319 = vmatprep.subr.mxu0 0.0
      %320 = vmatpush1.msra.mxu0 %v299
      %321 = vmatprep.subr.mxu0 0.0
      %322 = vmatpush1.msra.mxu0 %v298
      %323 = vmatprep.subr.mxu0 0.0
      %324 = vmatpush1.msra.mxu0 %v297
      %325 = vmatprep.subr.mxu0 0.0
      %326 = vmatpush1.msra.mxu0 %v296
      %327 = vmatprep.subr.mxu0 0.0
      %328 = vmatpush1.msra.mxu0 %v295
      %329 = vmatprep.subr.mxu0 0.0
      %330 = vmatpush1.msra.mxu0 %v294
      %331 = vmatprep.subr.mxu0 0.0
      %332 = vmatpush1.msra.mxu0 %v293
      %333 = vmatprep.subr.mxu0 0.0
      %334 = vmatpush1.msra.mxu0 %v292
      %335 = vmatprep.subr.mxu0 0.0
      %336 = vmatpush1.msra.mxu0 %v291
      %337 = vmatprep.subr.mxu0 0.0
      %338 = vmatpush1.msra.mxu0 %v290
      %339 = vmatprep.subr.mxu0 0.0
      %340 = vmatpush1.msra.mxu0 %v289
      %341 = vmatprep.subr.mxu0 0.0
      %342 = vmatpush1.msra.mxu0 %v288
      %343 = vmatprep.subr.mxu0 0.0
      %344 = vmatpush2.msra.mxu0 0.0
      %345 = vmatprep.subr.mxu0 0.0
      %346 = vmatpush2.msra.mxu0 0.0
      %347 = vmatprep.subr.mxu0 0.0
      %348 = vmatpush2.msra.mxu0 0.0
      %349 = vmatprep.subr.mxu0 0.0
      %350 = vmatpush2.msra.mxu0 0.0
      %351 = vmatprep.subr.mxu0 0.0
      %352 = vmatpush2.msra.mxu0 0.0
      %353 = vmatprep.subr.mxu0 0.0
      %354 = vmatpush2.msra.mxu0 0.0
      %355 = vmatprep.subr.mxu0 0.0
      %356 = vmatpush2.msra.mxu0 0.0
      %357 = vmatprep.subr.mxu0 0.0
      %358 = vmatpush2.msra.mxu0 0.0
      %359 = vmatprep.subr.mxu0 0.0
      %360 = vmatpush2.msra.mxu0 0.0
      %361 = vmatprep.subr.mxu0 0.0
      %362 = vmatpush2.msra.mxu0 0.0
      %363 = vmatprep.subr.mxu0 0.0
      %364 = vmatpush2.msra.mxu0 0.0
      %365 = vmatprep.subr.mxu0 0.0
      %366 = vmatpush2.msra.mxu0 0.0
      %367 = vmatprep.subr.mxu0 0.0
      %368 = vmatpush2.msra.mxu0 0.0
      %369 = vmatprep.subr.mxu0 0.0
      %370 = vmatpush2.msra.mxu0 0.0
      %371 = vmatprep.subr.mxu0 0.0
      %372 = vmatpush2.msra.mxu0 0.0
      %373 = vmatprep.subr.mxu0 0.0
      %374 = vmatpush2.msra.mxu0 0.0
      %375 = vmatprep.mubr.f32.mxu0 0.0
      %376 = vmatmul.mubr.f32.gmra.mxu0 %v287
      %v377 = vpop.f32.mrf.mxu0
      %v378 = vadd.f32 %v309, %v377
      %v379 = vpop.f32.mrf.mxu0
      %380 = vdwg.mxu0
      %381 = vst [vmem:[#allocation11] sm:$0xff] %v378
    $region37: #{tpu_custom_call.1} parent=1 // pred_fallthru
      _
    // Predicated region
    $region38: #{tpu_custom_call.1} parent=1 // pred_check
      _
    $region39: #{tpu_custom_call.1} parent=1 // pred_check_branch
      %383 = sbr.rel (0) target = $region41
    $region40: #{tpu_custom_call.1} parent=1 // pred_region
      %s385 = ssub.s32 128, 128
      %386 = vsyncadd [#allocation10], %s385
      %s388 = sshll.u32 [#allocation11], 4
      %s389 = int_to_ptr.vmem [resolvable:$true] %s388
      %391 = dma.vmem_to_hbm [thread:$0]  %s389, 128, %s7, [#allocation10]
    $region41: #{tpu_custom_call.1} parent=1 // pred_fallthru
      _
    // Predicated region
    $region42: #{tpu_custom_call.1} parent=1 // pred_check
      _
    $region43: #{tpu_custom_call.1} parent=1 // pred_check_branch
      %393 = sbr.rel (0) target = $region45
    $region44: #{tpu_custom_call.1} parent=1 // pred_region
      %394 = dma.done [#allocation10], 128
    $region45: #{tpu_custom_call.1} parent=1 // pred_fallthru
      _
    %395 = vsyncpa [#allocation9], 1
    %396 = vsyncpa [#allocation10], 1

// kernel: tpu_custom_call.1
$region0: #{tpu_custom_call.1}
  #allocation0 [shape = 'u32[]', space=smem, size = 0x4, offset = 0x4, fixed_abs, tag = 'smem constant byte address 0x4 - core index']
  #allocation1 [shape = 'u32[144,128]{1,0:T(1,128)}', space=vmem, size = 0x12000, scoped, tag = 'internal scratch']
  #allocation2 [shape = 'f32[8,128]{1,0:T(8,128)}', space=vmem, size = 0x1000, scoped, tag = 'scratch operand']
  #allocation3 [shape = 's32[8,128]{1,0:T(8,128)}', space=vmem, size = 0x1000, scoped, tag = 'scratch operand']
  #allocation4 [shape = 's32[128,128]{1,0:T(8,128)}', space=vmem, size = 0x10000, scoped, tag = 'scratch operand']
  #allocation5 [shape = 's32[1]{0}', space=sflag, size = 0x4, scoped, tag = 'scoped memory for tpu_custom_call.1']
  #allocation6 [shape = 's32[1]{0:T(128)S(6)}', space=smem, size = 0x200, scoped, tag = 'prefetched SMEM operand 0']
  #allocation7 [shape = 's32[1]{0:T(128)S(6)}', space=smem, size = 0x200, scoped, tag = 'prefetched SMEM operand 1']
  %s0 = inlined_call_operand.<no memory space> [shape: s32[1], index: 0, kind: input, shape index: {}]
  %s1 = inlined_call_operand.<no memory space> [shape: s32[1], index: 1, kind: input, shape index: {}]
  %s2 = inlined_call_operand.vmem [shape: s32[1,256], index: 2, kind: input, shape index: {}]
  %s3 = inlined_call_operand.vmem [shape: s32[1,256], index: 3, kind: input, shape index: {}]
  %s4 = inlined_call_operand.vmem [shape: f32[1,256], index: 4, kind: input, shape index: {}]
  %s5 = inlined_call_operand.hbm [shape: f32[128,128], index: 5, kind: input, shape index: {}]
  %s6 = inlined_call_operand.vmem [shape: f32[1,128], index: 6, kind: input, shape index: {}]
  %s7 = inlined_call_operand.hbm [shape: f32[8,128], index: 7, kind: output, shape index: {}]
  %s8 = sld [smem:[#allocation0]]
  $region46: #{tpu_custom_call.1} parent=0
    _
  %s10 = ssub.s32 1, %s8
  %s11 = scalar_select 0, %s10, %s8
  %12 = sst [smem:[#allocation6]] %s0
  %13 = sst [smem:[#allocation7]] %s1
  $region1: #{tpu_custom_call.1} parent=0
    #allocation8 [shape = 'u8[65536]{0}', space=vmem, size = 0x10000, scoped, tag = 'input window, operand 5, single buffered']
    #allocation9 [shape = 's32[1]{0}', space=sflag, size = 0x4, scoped, tag = 'scoped memory for tpu_custom_call.1']
    #allocation10 [shape = 's32[1]{0}', space=sflag, size = 0x4, scoped, tag = 'scoped memory for tpu_custom_call.1']
    #allocation11 [shape = 'u8[4096]{0}', space=vmem, size = 0x1000, scoped, tag = 'output window, operand 0, single buffered']
    %14 = vsyncpa [#allocation9], 0
    %15 = vsyncpa [#allocation10], 0
    // Predicated region
    $region2: #{tpu_custom_call.1} parent=1 // pred_check
      _
    $region3: #{tpu_custom_call.1} parent=1 // pred_check_branch
      %17 = sbr.rel (0) target = $region5
    $region4: #{tpu_custom_call.1} parent=1 // pred_region
      %s18 = sld [smem:[#allocation6]]
      %s19 = sadd.s32 %s18, 0
      %p20 = scmp.lt.s32.totalorder %s19, 1
      %s21 = scalar_select %p20, %s19, 1
      %s22 = scalar_lea.vmem %s2, %s21
      %s23 = sld [smem:[#allocation6]]
      %s24 = sadd.s32 %s23, 0
    $region5: #{tpu_custom_call.1} parent=1 // pred_fallthru
      _
    // Predicated region
    $region6: #{tpu_custom_call.1} parent=1 // pred_check
      _
    $region7: #{tpu_custom_call.1} parent=1 // pred_check_branch
      %26 = sbr.rel (0) target = $region9
    $region8: #{tpu_custom_call.1} parent=1 // pred_region
      %s27 = sld [smem:[#allocation6]]
      %s28 = sadd.s32 %s27, 0
      %p29 = scmp.lt.s32.totalorder %s28, 1
      %s30 = scalar_select %p29, %s28, 1
      %s31 = scalar_lea.vmem %s3, %s30
      %s32 = sld [smem:[#allocation6]]
      %s33 = sadd.s32 %s32, 0
    $region9: #{tpu_custom_call.1} parent=1 // pred_fallthru
      _
    // Predicated region
    $region10: #{tpu_custom_call.1} parent=1 // pred_check
      _
    $region11: #{tpu_custom_call.1} parent=1 // pred_check_branch
      %35 = sbr.rel (0) target = $region13
    $region12: #{tpu_custom_call.1} parent=1 // pred_region
      %s36 = sld [smem:[#allocation6]]
      %s37 = sadd.s32 %s36, 0
      %p38 = scmp.lt.s32.totalorder %s37, 1
      %s39 = scalar_select %p38, %s37, 1
      %s40 = scalar_lea.vmem %s4, %s39
      %s41 = sld [smem:[#allocation6]]
      %s42 = sadd.s32 %s41, 0
    $region13: #{tpu_custom_call.1} parent=1 // pred_fallthru
      _
    // Predicated region
    $region14: #{tpu_custom_call.1} parent=1 // pred_check
      _
    $region15: #{tpu_custom_call.1} parent=1 // pred_check_branch
      %44 = sbr.rel (0) target = $region17
    $region16: #{tpu_custom_call.1} parent=1 // pred_region
      %s46 = ssub.s32 2048, 2048
      %47 = vsyncadd [#allocation9], %s46
      %s48 = sshll.u32 [#allocation8], 4
      %s49 = int_to_ptr.vmem [resolvable:$true] %s48
      %54 = dma.hbm_to_vmem [thread:$0]  %s5, 2048, %s49, [#allocation9], 128, 128, 8
    $region17: #{tpu_custom_call.1} parent=1 // pred_fallthru
      _
    // Predicated region
    $region18: #{tpu_custom_call.1} parent=1 // pred_check
      _
    $region19: #{tpu_custom_call.1} parent=1 // pred_check_branch
      %56 = sbr.rel (0) target = $region21
    $region20: #{tpu_custom_call.1} parent=1 // pred_region
      _
    $region21: #{tpu_custom_call.1} parent=1 // pred_fallthru
      _
    // Predicated region
    $region22: #{tpu_custom_call.1} parent=1 // pred_check
      _
    $region23: #{tpu_custom_call.1} parent=1 // pred_check_branch
      %58 = sbr.rel (0) target = $region25
    $region24: #{tpu_custom_call.1} parent=1 // pred_region
      %59 = dma.done [#allocation9], 2048
    $region25: #{tpu_custom_call.1} parent=1 // pred_fallthru
      _
    %s60 = sld [smem:[#allocation6]]
    %s61 = sadd.s32 %s60, 0
    %p62 = scmp.lt.s32.totalorder %s61, 1
    %s63 = scalar_select %p62, %s61, 1
    %s64 = scalar_lea.vmem %s2, %s63
    %s65 = sld [smem:[#allocation6]]
    %s66 = sadd.s32 %s65, 0
    %p67 = scmp.lt.s32.totalorder %s66, 1
    %s68 = scalar_select %p67, %s66, 1
    %s69 = scalar_lea.vmem %s3, %s68
    %s70 = sld [smem:[#allocation6]]
    %s71 = sadd.s32 %s70, 0
    %p72 = scmp.lt.s32.totalorder %s71, 1
    %s73 = scalar_select %p72, %s71, 1
    %s74 = scalar_lea.vmem %s4, %s73
    %s75 = sld [smem:[#allocation6]]
    %s76 = sadd.s32 %s75, 0
    %p77 = scmp.lt.s32.totalorder %s76, 1
    %s78 = scalar_select %p77, %s76, 1
    %s79 = scalar_lea.vmem %s2, %s78
    %s80 = sld [smem:[#allocation6]]
    %s81 = sadd.s32 %s80, 0
    %s82 = sld [smem:[#allocation6]]
    %s83 = sadd.s32 %s82, 0
    %p84 = scmp.lt.s32.totalorder %s83, 1
    %s85 = scalar_select %p84, %s83, 1
    %s86 = scalar_lea.vmem %s3, %s85
    %s87 = sld [smem:[#allocation6]]
    %s88 = sadd.s32 %s87, 0
    %s89 = sld [smem:[#allocation6]]
    %s90 = sadd.s32 %s89, 0
    %p91 = scmp.lt.s32.totalorder %s90, 1
    %s92 = scalar_select %p91, %s90, 1
    %s93 = scalar_lea.vmem %s4, %s92
    %s94 = sld [smem:[#allocation6]]
    %s95 = sadd.s32 %s94, 0
    %p96 = scmp.eq.s32.totalorder 0, 0
    // Predicated region
    $region26: #{tpu_custom_call.1} parent=1 // pred_check
      %p97 = pneg %p96
    $region27: #{tpu_custom_call.1} parent=1 // pred_check_branch
      %99 = sbr.rel (%p97) target = $region29
    $region28: #{tpu_custom_call.1} parent=1 // pred_region
      %100 = vst [vmem:[#allocation2] sm:$0xff] 0.0
      %v101 = vlaneseq
      %v102 = vshrl.u32 %v101, 7
      %103 = vst [vmem:[#allocation3] sm:$0xff] %v102
      %v104 = vadd.s32 %v102, 8
      %v105 = vadd.s32 %v102, 16
      %v106 = vadd.s32 %v102, 24
      %v107 = vadd.s32 %v102, 32
      %v108 = vadd.s32 %v102, 40
      %v109 = vadd.s32 %v102, 48
      %v110 = vadd.s32 %v102, 56
      %v111 = vadd.s32 %v102, 64
      %v112 = vadd.s32 %v102, 72
      %v113 = vadd.s32 %v102, 80
      %v114 = vadd.s32 %v102, 88
      %v115 = vadd.s32 %v102, 96
      %v116 = vadd.s32 %v102, 104
      %v117 = vadd.s32 %v102, 112
      %v118 = vadd.s32 %v102, 120
      %119 = vst [vmem:[#allocation4] sm:$0xff] %v102
      %120 = vst [vmem:[#allocation4 + $0x8] sm:$0xff] %v104
      %121 = vst [vmem:[#allocation4 + $0x10] sm:$0xff] %v105
      %122 = vst [vmem:[#allocation4 + $0x18] sm:$0xff] %v106
      %123 = vst [vmem:[#allocation4 + $0x20] sm:$0xff] %v107
      %124 = vst [vmem:[#allocation4 + $0x28] sm:$0xff] %v108
      %125 = vst [vmem:[#allocation4 + $0x30] sm:$0xff] %v109
      %126 = vst [vmem:[#allocation4 + $0x38] sm:$0xff] %v110
      %127 = vst [vmem:[#allocation4 + $0x40] sm:$0xff] %v111
      %128 = vst [vmem:[#allocation4 + $0x48] sm:$0xff] %v112
      %129 = vst [vmem:[#allocation4 + $0x50] sm:$0xff] %v113
      %130 = vst [vmem:[#allocation4 + $0x58] sm:$0xff] %v114
      %131 = vst [vmem:[#allocation4 + $0x60] sm:$0xff] %v115
      %132 = vst [vmem:[#allocation4 + $0x68] sm:$0xff] %v116
      %133 = vst [vmem:[#allocation4 + $0x70] sm:$0xff] %v117
      %134 = vst [vmem:[#allocation4 + $0x78] sm:$0xff] %v118
    $region29: #{tpu_custom_call.1} parent=1 // pred_fallthru
      _
    %s135 = sld [smem:[#allocation7]]
    %p136 = scmp.lt.s32.totalorder 0, %s135
    // Predicated region
    $region30: #{tpu_custom_call.1} parent=1 // pred_check
      %p137 = pneg %p136
    $region31: #{tpu_custom_call.1} parent=1 // pred_check_branch
      %139 = sbr.rel (%p137) target = $region33
    $region32: #{tpu_custom_call.1} parent=1 // pred_region
      %s140 = smul.u32 0, 8
      %v141 = vld [vmem:[%s79] sm:$0x1]
      %v142 = vstv %s140
      %v143 = vsub.s32 %v141, %v142
      %v144 = vld [vmem:[#allocation3] sm:$0xff]
      %v145 = vlaneseq
      %v146 = vshrl.u32 %v145, 7
      %v147 = vsub.s32 0, %v146
      %v148 = vrot.slane %v143, %v147
      %vm149 = vcmp.eq.s32.totalorder %v144, %v148
      %v150 = vld [vmem:[%s93] sm:$0x1]
      %v152 = vlaneseq
      %v153 = vshrl.u32 %v152, 7
      %v154 = vsub.s32 0, %v153
      %v155 = vrot.slane %v150, %v154
      %v157 = vsel %vm149, %v155, 0.0
      %v158 = vld [vmem:[#allocation4] sm:$0xff]
      %v159 = vld [vmem:[#allocation4 + $0x8] sm:$0xff]
      %v160 = vld [vmem:[#allocation4 + $0x10] sm:$0xff]
      %v161 = vld [vmem:[#allocation4 + $0x18] sm:$0xff]
      %v162 = vld [vmem:[#allocation4 + $0x20] sm:$0xff]
      %v163 = vld [vmem:[#allocation4 + $0x28] sm:$0xff]
      %v164 = vld [vmem:[#allocation4 + $0x30] sm:$0xff]
      %v165 = vld [vmem:[#allocation4 + $0x38] sm:$0xff]
      %v166 = vld [vmem:[#allocation4 + $0x40] sm:$0xff]
      %v167 = vld [vmem:[#allocation4 + $0x48] sm:$0xff]
      %v168 = vld [vmem:[#allocation4 + $0x50] sm:$0xff]
      %v169 = vld [vmem:[#allocation4 + $0x58] sm:$0xff]
      %v170 = vld [vmem:[#allocation4 + $0x60] sm:$0xff]
      %v171 = vld [vmem:[#allocation4 + $0x68] sm:$0xff]
      %v172 = vld [vmem:[#allocation4 + $0x70] sm:$0xff]
      %v173 = vld [vmem:[#allocation4 + $0x78] sm:$0xff]
      %v174 = vld [vmem:[%s86] sm:$0x1]
      %v175 = vlaneseq
      %v176 = vshrl.u32 %v175, 7
      %v177 = vsub.s32 0, %v176
      %v178 = vrot.slane %v174, %v177
      %vm179 = vcmp.eq.s32.totalorder %v158, %v178
      %vm180 = vcmp.eq.s32.totalorder %v159, %v178
      %vm181 = vcmp.eq.s32.totalorder %v160, %v178
      %vm182 = vcmp.eq.s32.totalorder %v161, %v178
      %vm183 = vcmp.eq.s32.totalorder %v162, %v178
      %vm184 = vcmp.eq.s32.totalorder %v163, %v178
      %vm185 = vcmp.eq.s32.totalorder %v164, %v178
      %vm186 = vcmp.eq.s32.totalorder %v165, %v178
      %vm187 = vcmp.eq.s32.totalorder %v166, %v178
      %vm188 = vcmp.eq.s32.totalorder %v167, %v178
      %vm189 = vcmp.eq.s32.totalorder %v168, %v178
      %vm190 = vcmp.eq.s32.totalorder %v169, %v178
      %vm191 = vcmp.eq.s32.totalorder %v170, %v178
      %vm192 = vcmp.eq.s32.totalorder %v171, %v178
      %vm193 = vcmp.eq.s32.totalorder %v172, %v178
      %vm194 = vcmp.eq.s32.totalorder %v173, %v178
      %v195 = vsel %vm179, 1.0, 0.0
      %v196 = vsel %vm180, 1.0, 0.0
      %v197 = vsel %vm181, 1.0, 0.0
      %v198 = vsel %vm182, 1.0, 0.0
      %v199 = vsel %vm183, 1.0, 0.0
      %v200 = vsel %vm184, 1.0, 0.0
      %v201 = vsel %vm185, 1.0, 0.0
      %v202 = vsel %vm186, 1.0, 0.0
      %v203 = vsel %vm187, 1.0, 0.0
      %v204 = vsel %vm188, 1.0, 0.0
      %v205 = vsel %vm189, 1.0, 0.0
      %v206 = vsel %vm190, 1.0, 0.0
      %v207 = vsel %vm191, 1.0, 0.0
      %v208 = vsel %vm192, 1.0, 0.0
      %v209 = vsel %vm193, 1.0, 0.0
      %v210 = vsel %vm194, 1.0, 0.0
      %v211 = vld [vmem:[#allocation2] sm:$0xff]
      %212 = vmatprep.subr.mxu0 0.0
      %213 = vmatpush1.xpose.msra.mxu0 %v210
      %214 = vmatprep.subr.mxu0 0.0
      %215 = vmatpush1.xpose.msra.mxu0 %v209
      %216 = vmatprep.subr.mxu0 0.0
      %217 = vmatpush1.xpose.msra.mxu0 %v208
      %218 = vmatprep.subr.mxu0 0.0
      %219 = vmatpush1.xpose.msra.mxu0 %v207
      %220 = vmatprep.subr.mxu0 0.0
      %221 = vmatpush1.xpose.msra.mxu0 %v206
      %222 = vmatprep.subr.mxu0 0.0
      %223 = vmatpush1.xpose.msra.mxu0 %v205
      %224 = vmatprep.subr.mxu0 0.0
      %225 = vmatpush1.xpose.msra.mxu0 %v204
      %226 = vmatprep.subr.mxu0 0.0
      %227 = vmatpush1.xpose.msra.mxu0 %v203
      %228 = vmatprep.subr.mxu0 0.0
      %229 = vmatpush1.xpose.msra.mxu0 %v202
      %230 = vmatprep.subr.mxu0 0.0
      %231 = vmatpush1.xpose.msra.mxu0 %v201
      %232 = vmatprep.subr.mxu0 0.0
      %233 = vmatpush1.xpose.msra.mxu0 %v200
      %234 = vmatprep.subr.mxu0 0.0
      %235 = vmatpush1.xpose.msra.mxu0 %v199
      %236 = vmatprep.subr.mxu0 0.0
      %237 = vmatpush1.xpose.msra.mxu0 %v198
      %238 = vmatprep.subr.mxu0 0.0
      %239 = vmatpush1.xpose.msra.mxu0 %v197
      %240 = vmatprep.subr.mxu0 0.0
      %241 = vmatpush1.xpose.msra.mxu0 %v196
      %242 = vmatprep.subr.mxu0 0.0
      %243 = vmatpush1.xpose.msra.mxu0 %v195
      %244 = vmatprep.subr.mxu0 0.0
      %245 = vmatpush2.xpose.msra.mxu0 0.0
      %246 = vmatprep.subr.mxu0 0.0
      %247 = vmatpush2.xpose.msra.mxu0 0.0
      %248 = vmatprep.subr.mxu0 0.0
      %249 = vmatpush2.xpose.msra.mxu0 0.0
      %250 = vmatprep.subr.mxu0 0.0
      %251 = vmatpush2.xpose.msra.mxu0 0.0
      %252 = vmatprep.subr.mxu0 0.0
      %253 = vmatpush2.xpose.msra.mxu0 0.0
      %254 = vmatprep.subr.mxu0 0.0
      %255 = vmatpush2.xpose.msra.mxu0 0.0
      %256 = vmatprep.subr.mxu0 0.0
      %257 = vmatpush2.xpose.msra.mxu0 0.0
      %258 = vmatprep.subr.mxu0 0.0
      %259 = vmatpush2.xpose.msra.mxu0 0.0
      %260 = vmatprep.subr.mxu0 0.0
      %261 = vmatpush2.xpose.msra.mxu0 0.0
      %262 = vmatprep.subr.mxu0 0.0
      %263 = vmatpush2.xpose.msra.mxu0 0.0
      %264 = vmatprep.subr.mxu0 0.0
      %265 = vmatpush2.xpose.msra.mxu0 0.0
      %266 = vmatprep.subr.mxu0 0.0
      %267 = vmatpush2.xpose.msra.mxu0 0.0
      %268 = vmatprep.subr.mxu0 0.0
      %269 = vmatpush2.xpose.msra.mxu0 0.0
      %270 = vmatprep.subr.mxu0 0.0
      %271 = vmatpush2.xpose.msra.mxu0 0.0
      %272 = vmatprep.subr.mxu0 0.0
      %273 = vmatpush2.xpose.msra.mxu0 0.0
      %274 = vmatprep.subr.mxu0 0.0
      %275 = vmatpush2.xpose.msra.mxu0 0.0
      %276 = vmatprep.mubr.f32.mxu0 0.0
      %277 = vmatmul.mubr.f32.gmra.mxu0 %v157
      %v278 = vpop.f32.mrf.mxu0
      %v279 = vadd.f32 0.0, %v278
      %v280 = vpop.f32.mrf.mxu0
      %281 = vdwg.mxu0
      %v282 = vadd.f32 %v211, %v279
      %283 = vst [vmem:[#allocation2] sm:$0xff] %v282
    $region33: #{tpu_custom_call.1} parent=1 // pred_fallthru
      _
    // Predicated region
    $region34: #{tpu_custom_call.1} parent=1 // pred_check
      %p284 = pneg %p96
    $region35: #{tpu_custom_call.1} parent=1 // pred_check_branch
      %286 = sbr.rel (%p284) target = $region37
    $region36: #{tpu_custom_call.1} parent=1 // pred_region
      %v287 = vld [vmem:[#allocation2] sm:$0xff]
      %v288 = vld [vmem:[#allocation8] sm:$0xff]
      %v289 = vld [vmem:[#allocation8 + $0x8] sm:$0xff]
      %v290 = vld [vmem:[#allocation8 + $0x10] sm:$0xff]
      %v291 = vld [vmem:[#allocation8 + $0x18] sm:$0xff]
      %v292 = vld [vmem:[#allocation8 + $0x20] sm:$0xff]
      %v293 = vld [vmem:[#allocation8 + $0x28] sm:$0xff]
      %v294 = vld [vmem:[#allocation8 + $0x30] sm:$0xff]
      %v295 = vld [vmem:[#allocation8 + $0x38] sm:$0xff]
      %v296 = vld [vmem:[#allocation8 + $0x40] sm:$0xff]
      %v297 = vld [vmem:[#allocation8 + $0x48] sm:$0xff]
      %v298 = vld [vmem:[#allocation8 + $0x50] sm:$0xff]
      %v299 = vld [vmem:[#allocation8 + $0x58] sm:$0xff]
      %v300 = vld [vmem:[#allocation8 + $0x60] sm:$0xff]
      %v301 = vld [vmem:[#allocation8 + $0x68] sm:$0xff]
      %v302 = vld [vmem:[#allocation8 + $0x70] sm:$0xff]
      %v303 = vld [vmem:[#allocation8 + $0x78] sm:$0xff]
      %v304 = vld [vmem:[%s6] sm:$0x1]
      %v306 = vlaneseq
      %v307 = vshrl.u32 %v306, 7
      %v308 = vsub.s32 0, %v307
      %v309 = vrot.slane %v304, %v308
      %311 = vmatprep.subr.mxu0 0.0
      %312 = vmatpush1.msra.mxu0 %v303
      %313 = vmatprep.subr.mxu0 0.0
      %314 = vmatpush1.msra.mxu0 %v302
      %315 = vmatprep.subr.mxu0 0.0
      %316 = vmatpush1.msra.mxu0 %v301
      %317 = vmatprep.subr.mxu0 0.0
      %318 = vmatpush1.msra.mxu0 %v300
      %319 = vmatprep.subr.mxu0 0.0
      %320 = vmatpush1.msra.mxu0 %v299
      %321 = vmatprep.subr.mxu0 0.0
      %322 = vmatpush1.msra.mxu0 %v298
      %323 = vmatprep.subr.mxu0 0.0
      %324 = vmatpush1.msra.mxu0 %v297
      %325 = vmatprep.subr.mxu0 0.0
      %326 = vmatpush1.msra.mxu0 %v296
      %327 = vmatprep.subr.mxu0 0.0
      %328 = vmatpush1.msra.mxu0 %v295
      %329 = vmatprep.subr.mxu0 0.0
      %330 = vmatpush1.msra.mxu0 %v294
      %331 = vmatprep.subr.mxu0 0.0
      %332 = vmatpush1.msra.mxu0 %v293
      %333 = vmatprep.subr.mxu0 0.0
      %334 = vmatpush1.msra.mxu0 %v292
      %335 = vmatprep.subr.mxu0 0.0
      %336 = vmatpush1.msra.mxu0 %v291
      %337 = vmatprep.subr.mxu0 0.0
      %338 = vmatpush1.msra.mxu0 %v290
      %339 = vmatprep.subr.mxu0 0.0
      %340 = vmatpush1.msra.mxu0 %v289
      %341 = vmatprep.subr.mxu0 0.0
      %342 = vmatpush1.msra.mxu0 %v288
      %343 = vmatprep.subr.mxu0 0.0
      %344 = vmatpush2.msra.mxu0 0.0
      %345 = vmatprep.subr.mxu0 0.0
      %346 = vmatpush2.msra.mxu0 0.0
      %347 = vmatprep.subr.mxu0 0.0
      %348 = vmatpush2.msra.mxu0 0.0
      %349 = vmatprep.subr.mxu0 0.0
      %350 = vmatpush2.msra.mxu0 0.0
      %351 = vmatprep.subr.mxu0 0.0
      %352 = vmatpush2.msra.mxu0 0.0
      %353 = vmatprep.subr.mxu0 0.0
      %354 = vmatpush2.msra.mxu0 0.0
      %355 = vmatprep.subr.mxu0 0.0
      %356 = vmatpush2.msra.mxu0 0.0
      %357 = vmatprep.subr.mxu0 0.0
      %358 = vmatpush2.msra.mxu0 0.0
      %359 = vmatprep.subr.mxu0 0.0
      %360 = vmatpush2.msra.mxu0 0.0
      %361 = vmatprep.subr.mxu0 0.0
      %362 = vmatpush2.msra.mxu0 0.0
      %363 = vmatprep.subr.mxu0 0.0
      %364 = vmatpush2.msra.mxu0 0.0
      %365 = vmatprep.subr.mxu0 0.0
      %366 = vmatpush2.msra.mxu0 0.0
      %367 = vmatprep.subr.mxu0 0.0
      %368 = vmatpush2.msra.mxu0 0.0
      %369 = vmatprep.subr.mxu0 0.0
      %370 = vmatpush2.msra.mxu0 0.0
      %371 = vmatprep.subr.mxu0 0.0
      %372 = vmatpush2.msra.mxu0 0.0
      %373 = vmatprep.subr.mxu0 0.0
      %374 = vmatpush2.msra.mxu0 0.0
      %375 = vmatprep.mubr.f32.mxu0 0.0
      %376 = vmatmul.mubr.f32.gmra.mxu0 %v287
      %v377 = vpop.f32.mrf.mxu0
      %v378 = vadd.f32 %v309, %v377
      %v379 = vpop.f32.mrf.mxu0
      %380 = vdwg.mxu0
      %381 = vst [vmem:[#allocation11] sm:$0xff] %v378
    $region37: #{tpu_custom_call.1} parent=1 // pred_fallthru
      _
    // Predicated region
    $region38: #{tpu_custom_call.1} parent=1 // pred_check
      _
    $region39: #{tpu_custom_call.1} parent=1 // pred_check_branch
      %383 = sbr.rel (0) target = $region41
    $region40: #{tpu_custom_call.1} parent=1 // pred_region
      %s385 = ssub.s32 128, 128
      %386 = vsyncadd [#allocation10], %s385
      %s388 = sshll.u32 [#allocation11], 4
      %s389 = int_to_ptr.vmem [resolvable:$true] %s388
      %391 = dma.vmem_to_hbm [thread:$0]  %s389, 128, %s7, [#allocation10]
    $region41: #{tpu_custom_call.1} parent=1 // pred_fallthru
      _
    // Predicated region
    $region42: #{tpu_custom_call.1} parent=1 // pred_check
      _
    $region43: #{tpu_custom_call.1} parent=1 // pred_check_branch
      %393 = sbr.rel (0) target = $region45
    $region44: #{tpu_custom_call.1} parent=1 // pred_region
      %394 = dma.done [#allocation10], 128
    $region45: #{tpu_custom_call.1} parent=1 // pred_fallthru
      _
    %395 = vsyncpa [#allocation9], 1
    %396 = vsyncpa [#allocation10], 1

</llo_original>
